<compile_context>
chip_gen: v6e
topology: v6e:2x2x1
jax: 0.10.0
libtpu: 0.0.40
codegen_flags: <defaults>
</compile_context>

<pallas_src>
import numpy as np
import jax
import jax.numpy as jnp
from jax import lax
from jax.experimental import pallas as pl
from jax.experimental.pallas import tpu as pltpu

BN_EPS = 1e-5
NEG_SLOPE = 0.2
LANE = 128


def _round_up(x, m):
    return (x + m - 1) // m * m


def _pick_row_block(Ho, Wo, T, TCs, Coutp, target_m=256, vmem_cap=8 * 1024 * 1024):
    """Output-row block RB: aim for M = RB*Wo ~ 256, shrink until blocks fit a VMEM budget."""
    rb = max(1, min(Ho, max(1, target_m // max(Wo, 1))))

    def bytes_needed(rb):
        x_b = (rb + T - 1) * Wo * TCs * 2          # bf16 input slab
        acc_b = rb * Wo * Coutp * 4                # f32 scratch accumulator
        conv_b = rb * Wo * Coutp * 2               # bf16 conv block
        return 2 * x_b + acc_b + 2 * conv_b        # double-buffered in/out + scratch

    while rb > 1 and bytes_needed(rb) > vmem_cap:
        rb = max(1, rb // 2)
    return rb


def _pick_row_tile(m, target=512):
    """Largest multiple-of-8 divisor of m that is <= target (elementwise pass row tile)."""
    cap = min(m, target)
    start = cap - (cap % 8)
    for cand in range(start, 0, -8):
        if m % cand == 0:
            return cand
    return m  # TODO(synk): rows with no multiple-of-8 divisor fall back to a single block


def make_conv_stats_kernel(T, RB, Wo, TCs, Coutp, Ho, HB):
    """Pass 0: conv for RB output rows of one image (T tap-matmuls accumulated in f32 VMEM
    scratch) + per-block partial BN statistics (sum, sum of squares)."""
    need_mask = (HB * RB != Ho)

    def kernel(x_ref, w_ref, conv_ref, stats_ref, acc_ref):
        # x_ref:    (1, RB+T-1, Wo, TCs)  bf16   horizontal taps pre-folded into channels
        # w_ref:    (T, TCs, Coutp)       bf16   constant index -> fetched once, stays resident
        # conv_ref: (1, RB*Wo, Coutp)     bf16
        # stats_ref:(1, 2, Coutp)         f32
        # acc_ref:  (RB*Wo, Coutp)        f32    VMEM scratch accumulator
        for th in range(T):                                  # static vertical taps, unrolled
            lhs = x_ref[0, th:th + RB].reshape(RB * Wo, TCs)
            part = jnp.dot(lhs, w_ref[th], preferred_element_type=jnp.float32)
            if th == 0:
                acc_ref[...] = part
            else:
                acc_ref[...] += part

        acc = acc_ref[...]
        conv_ref[0] = acc.astype(conv_ref.dtype)

        if need_mask:
            # Last row block of an image may contain zero-padded output rows; exclude them
            # from the GLOBAL batch statistics (valid rows are a contiguous prefix).
            hb = pl.program_id(0) % HB
            limit = jnp.minimum(Ho - hb * RB, RB) * Wo
            row_id = lax.broadcasted_iota(jnp.int32, (RB * Wo, 1), 0)
            acc_m = acc * (row_id < limit).astype(jnp.float32)
        else:
            acc_m = acc
        # TODO(synk): E[x^2]-E[x]^2 cancels badly when |mean| >> std; a shifted sum-of-squares
        # would be more robust (fine for conv activations centered near zero).
        stats_ref[0, 0:1, :] = jnp.sum(acc_m, axis=0, keepdims=True)
        stats_ref[0, 1:2, :] = jnp.sum(acc_m * acc, axis=0, keepdims=True)

    return kernel


def bn_act_kernel(x_ref, a_ref, b_ref, o_ref):
    """Pass 1: folded BN (y = x*a + b) + LeakyReLU(0.2), 128-lane-dense layout."""
    y = x_ref[...].astype(jnp.float32) * a_ref[...] + b_ref[...]
    o_ref[...] = jnp.where(y >= 0, y, NEG_SLOPE * y).astype(o_ref.dtype)


def cnn_block_pallas(x, weight, gamma, beta, stride, kernel_size):
    """x: [N, Cin, H, W] (NCHW f32); weight: [Cout, Cin, kH, kW] (OIHW, bias=False)."""
    N, Cin, H, W = x.shape
    Cout = weight.shape[0]
    K, s = kernel_size, stride
    pad = (K - 1) // 2
    Ho = (H + 2 * pad - K) // s + 1
    Wo = (W + 2 * pad - K) // s + 1

    T = -(-K // s)                 # ceil(K/s) taps per spatial dim after stride space-to-depth
    K_eff = T * s
    Cs = s * s * Cin               # stride phases folded into channels
    TCs = T * Cs                   # + horizontal taps folded into the contraction dim
    Coutp = _round_up(Cout, LANE)  # lane-dense output channels

    RB = _pick_row_block(Ho, Wo, T, TCs, Coutp)
    HB = -(-Ho // RB)
    Ho_pad = HB * RB
    NB = N * HB

    Hs = Ho_pad + T - 1            # space-to-depth rows incl. vertical tap halo / row padding
    Ws = Wo + T - 1
    Hp_use, Wp_use = Hs * s, Ws * s

    # ---- glue: NCHW -> NHWC, zero-pad, stride space-to-depth (no K*K im2col) ----
    x_nhwc = jnp.transpose(x, (0, 2, 3, 1))                               # [N, H, W, Cin]
    pad_b = max(0, Hp_use - (H + pad))
    pad_r = max(0, Wp_use - (W + pad))
    x_p = jnp.pad(x_nhwc, ((0, 0), (pad, pad_b), (pad, pad_r), (0, 0)))[:, :Hp_use, :Wp_use, :]
    x_s2d = (x_p.reshape(N, Hs, s, Ws, s, Cin)
                 .transpose(0, 1, 3, 2, 4, 5)
                 .reshape(N, Hs, Ws, Cs))                                 # (ph, pw, cin) channels
    # horizontal taps -> channels: [N, Hs, Wo, T*Cs]
    x_h = jnp.concatenate([x_s2d[:, :, tw:tw + Wo, :] for tw in range(T)], axis=-1)
    # overlapping RB-row slabs (T-1 row halo) per grid step, bf16 for the MXU
    row_idx = (np.arange(HB, dtype=np.int32)[:, None] * RB
               + np.arange(RB + T - 1, dtype=np.int32)[None, :]).reshape(-1)
    x_blocks = (jnp.take(x_h, jnp.asarray(row_idx), axis=1)
                   .reshape(NB, RB + T - 1, Wo, TCs)
                   .astype(jnp.bfloat16))

    # Weights OIHW -> [T, T*Cs, Coutp]: zero-pad K->K_eff and Cout->Coutp, (tw, ph, pw, cin) order.
    w_p = jnp.pad(weight, ((0, Coutp - Cout), (0, 0), (0, K_eff - K), (0, K_eff - K)))
    w_folded = (w_p.reshape(Coutp, Cin, T, s, T, s)
                   .transpose(2, 4, 3, 5, 1, 0)                           # (th, tw, ph, pw, cin, co)
                   .reshape(T, TCs, Coutp)
                   .astype(jnp.bfloat16))

    # ---- pass 0: conv (tap-accumulated matmuls) + partial BN statistics ----
    conv_kernel = make_conv_stats_kernel(T, RB, Wo, TCs, Coutp, Ho, HB)
    conv_out, part_stats = pl.pallas_call(
        conv_kernel,
        out_shape=(jax.ShapeDtypeStruct((NB, RB * Wo, Coutp), jnp.bfloat16),
                   jax.ShapeDtypeStruct((NB, 2, Coutp), jnp.float32)),
        grid=(NB,),
        in_specs=[
            pl.BlockSpec((1, RB + T - 1, Wo, TCs), lambda i: (i, 0, 0, 0)),
            pl.BlockSpec((T, TCs, Coutp), lambda i: (0, 0, 0)),
        ],
        out_specs=[
            pl.BlockSpec((1, RB * Wo, Coutp), lambda i: (i, 0, 0)),
            pl.BlockSpec((1, 2, Coutp), lambda i: (i, 0, 0)),
        ],
        scratch_shapes=[pltpu.VMEM((RB * Wo, Coutp), jnp.float32)],
        compiler_params=pltpu.CompilerParams(
            dimension_semantics=("parallel",),
            vmem_limit_bytes=32 * 1024 * 1024,
        ),
        cost_estimate=pl.CostEstimate(
            flops=2 * NB * T * (RB * Wo) * TCs * Coutp,
            transcendentals=0,
            bytes_accessed=(NB * (RB + T - 1) * Wo * TCs * 2
                            + T * TCs * Coutp * 2
                            + NB * RB * Wo * Coutp * 2
                            + NB * 2 * Coutp * 4),
        ),
    )(x_blocks, w_folded)

    # ---- glue: finalize GLOBAL batch statistics, fold BN into per-channel (a, b) ----
    sums = jnp.sum(part_stats, axis=0)                                    # [2, Coutp]
    cnt = float(N * Ho * Wo)                                              # true count (padding excluded)
    mean = sums[0] / cnt
    var = jnp.maximum(sums[1] / cnt - mean * mean, 0.0)                   # biased var (train fwd)
    gamma_p = jnp.pad(gamma.astype(jnp.float32), (0, Coutp - Cout))       # padded channels -> a=b=0
    beta_p = jnp.pad(beta.astype(jnp.float32), (0, Coutp - Cout))
    a = gamma_p * lax.rsqrt(var + BN_EPS)
    b = beta_p - mean * a

    # ---- pass 1: normalize + LeakyReLU on a lane-dense [rows, Coutp] slab ----
    M2 = NB * RB * Wo
    TR = _pick_row_tile(M2)
    conv2 = conv_out.reshape(M2, Coutp)                                   # order-preserving, free
    y2d = pl.pallas_call(
        bn_act_kernel,
        out_shape=jax.ShapeDtypeStruct((M2, Coutp), jnp.float32),
        grid=(M2 // TR,),
        in_specs=[
            pl.BlockSpec((TR, Coutp), lambda i: (i, 0)),
            pl.BlockSpec((1, Coutp), lambda i: (0, 0)),
            pl.BlockSpec((1, Coutp), lambda i: (0, 0)),
        ],
        out_specs=pl.BlockSpec((TR, Coutp), lambda i: (i, 0)),
        compiler_params=pltpu.CompilerParams(
            dimension_semantics=("parallel",),
            vmem_limit_bytes=32 * 1024 * 1024,
        ),
    )(conv2, a.reshape(1, Coutp), b.reshape(1, Coutp))

    # ---- glue: drop row/channel padding, back to NCHW ----
    y = y2d.reshape(N, Ho_pad, Wo, Coutp)[:, :Ho, :, :Cout]
    return jnp.transpose(y, (0, 3, 1, 2))                                 # [N, Cout, Ho, Wo]


def cnn_block_reference(x, weight, gamma, beta, stride, kernel_size):
    """Pure-JAX reference mirroring the PyTorch forward (train-mode BN)."""
    pad = (kernel_size - 1) // 2
    conv = lax.conv_general_dilated(
        x, weight,
        window_strides=(stride, stride),
        padding=((pad, pad), (pad, pad)),
        dimension_numbers=("NCHW", "OIHW", "NCHW"),
    )
    mean = jnp.mean(conv, axis=(0, 2, 3), keepdims=True)
    var = jnp.mean((conv - mean) ** 2, axis=(0, 2, 3), keepdims=True)
    norm = (conv - mean) * lax.rsqrt(var + BN_EPS)
    y = norm * gamma.reshape(1, -1, 1, 1) + beta.reshape(1, -1, 1, 1)
    return jnp.where(y >= 0, y, NEG_SLOPE * y)


if __name__ == "__main__":
    # Module config: CNNBlock(in_channels=4, out_channels=8, stride=2, kernel_size=4)
    in_channels, out_channels = 4, 8
    stride, kernel_size = 2, 4
    N, H, W = 2, 16, 16

    key = jax.random.PRNGKey(0)
    kx, kw, kg, kb = jax.random.split(key, 4)
    x = jax.random.normal(kx, (N, in_channels, H, W), dtype=jnp.float32)
    weight = 0.1 * jax.random.normal(
        kw, (out_channels, in_channels, kernel_size, kernel_size), dtype=jnp.float32
    )
    gamma = 1.0 + 0.1 * jax.random.normal(kg, (out_channels,), dtype=jnp.float32)
    beta = 0.1 * jax.random.normal(kb, (out_channels,), dtype=jnp.float32)

    fn = jax.jit(cnn_block_pallas, static_argnums=(4, 5))
    out = jax.block_until_ready(fn(x, weight, gamma, beta, stride, kernel_size))
    ref = jax.block_until_ready(cnn_block_reference(x, weight, gamma, beta, stride, kernel_size))

    # bf16 MXU inputs + bf16 conv intermediate with f32 accumulation/statistics -> loosened tol.
    np.testing.assert_allclose(np.asarray(out), np.asarray(ref), rtol=2e-2, atol=2e-2)
    print("KERNEL_OK")
</pallas_src>

<mosaic_0001>
module attributes {stable_mosaic.version = 11 : i64} {
  func.func @kernel(%arg0: i32, %arg1: memref<1x9x8x32xbf16, #tpu.memory_space<vmem>>, %arg2: memref<2x32x128xbf16, #tpu.memory_space<vmem>>, %arg3: memref<1x64x128xbf16, #tpu.memory_space<vmem>>, %arg4: memref<1x2x128xf32, #tpu.memory_space<vmem>>, %arg5: memref<64x128xf32, #tpu.memory_space<vmem>>) attributes {dimension_semantics = [#tpu.dimension_semantics<parallel>], iteration_bounds = array<i64: 2>, scalar_prefetch = 0 : i64, scratch_operands = 1 : i64, tpu.core_type = #tpu.core_type<tc>, window_params = [{transform_indices = @transform_0, window_bounds = array<i64: 1, 9, 8, 32>}, {pipeline_mode = #tpu.pipeline_mode<synchronous>, transform_indices = @transform_1, window_bounds = array<i64: 2, 32, 128>}, {transform_indices = @transform_2, window_bounds = array<i64: 1, 64, 128>}, {transform_indices = @transform_3, window_bounds = array<i64: 1, 2, 128>}]} {
    %c0 = arith.constant 0 : index
    %c0_0 = arith.constant 0 : index
    %c0_1 = arith.constant 0 : index
    %c0_2 = arith.constant 0 : index
    %0 = vector.load %arg1[%c0, %c0_0, %c0_1, %c0_2] : memref<1x9x8x32xbf16, #tpu.memory_space<vmem>>, vector<1x8x8x32xbf16>
    %1 = vector.shape_cast %0 : vector<1x8x8x32xbf16> to vector<8x8x32xbf16>
    %2 = vector.shape_cast %1 : vector<8x8x32xbf16> to vector<64x32xbf16>
    %c0_3 = arith.constant 0 : index
    %c0_4 = arith.constant 0 : index
    %c0_5 = arith.constant 0 : index
    %3 = vector.load %arg2[%c0_3, %c0_4, %c0_5] : memref<2x32x128xbf16, #tpu.memory_space<vmem>>, vector<1x32x128xbf16>
    %4 = vector.shape_cast %3 : vector<1x32x128xbf16> to vector<32x128xbf16>
    %cst = arith.constant dense<0.000000e+00> : vector<64x128xf32>
    %5 = tpu.matmul %2, %4, %cst {dimension_numbers = #tpu.dot_dimension_numbers<[1], [0], [0], [1], [0, 0, 1, 1], [], []>} : vector<64x32xbf16>, vector<32x128xbf16>, vector<64x128xf32> -> vector<64x128xf32>
    %c0_6 = arith.constant 0 : index
    %c0_7 = arith.constant 0 : index
    %6 = vector.load %arg5[%c0_6, %c0_7] : memref<64x128xf32, #tpu.memory_space<vmem>>, vector<64x128xf32>
    tpu.vector_store %arg5[%c0_6, %c0_7], %5 {strides = array<i32>} : memref<64x128xf32, #tpu.memory_space<vmem>>, vector<64x128xf32>,
    %c0_8 = arith.constant 0 : index
    %c1 = arith.constant 1 : index
    %c0_9 = arith.constant 0 : index
    %c0_10 = arith.constant 0 : index
    %7 = vector.load %arg1[%c0_8, %c1, %c0_9, %c0_10] : memref<1x9x8x32xbf16, #tpu.memory_space<vmem>>, vector<1x8x8x32xbf16>
    %8 = vector.shape_cast %7 : vector<1x8x8x32xbf16> to vector<8x8x32xbf16>
    %9 = vector.shape_cast %8 : vector<8x8x32xbf16> to vector<64x32xbf16>
    %c1_11 = arith.constant 1 : index
    %c0_12 = arith.constant 0 : index
    %c0_13 = arith.constant 0 : index
    %10 = vector.load %arg2[%c1_11, %c0_12, %c0_13] : memref<2x32x128xbf16, #tpu.memory_space<vmem>>, vector<1x32x128xbf16>
    %11 = vector.shape_cast %10 : vector<1x32x128xbf16> to vector<32x128xbf16>
    %cst_14 = arith.constant dense<0.000000e+00> : vector<64x128xf32>
    %12 = tpu.matmul %9, %11, %cst_14 {dimension_numbers = #tpu.dot_dimension_numbers<[1], [0], [0], [1], [0, 0, 1, 1], [], []>} : vector<64x32xbf16>, vector<32x128xbf16>, vector<64x128xf32> -> vector<64x128xf32>
    %c0_15 = arith.constant 0 : index
    %c0_16 = arith.constant 0 : index
    %13 = vector.load %arg5[%c0_15, %c0_16] : memref<64x128xf32, #tpu.memory_space<vmem>>, vector<64x128xf32>
    %14 = arith.addf %13, %12 : vector<64x128xf32>
    %c0_17 = arith.constant 0 : index
    %c0_18 = arith.constant 0 : index
    %15 = vector.load %arg5[%c0_17, %c0_18] : memref<64x128xf32, #tpu.memory_space<vmem>>, vector<64x128xf32>
    tpu.vector_store %arg5[%c0_17, %c0_18], %14 {strides = array<i32>} : memref<64x128xf32, #tpu.memory_space<vmem>>, vector<64x128xf32>,
    %c0_19 = arith.constant 0 : index
    %c0_20 = arith.constant 0 : index
    %16 = vector.load %arg5[%c0_19, %c0_20] : memref<64x128xf32, #tpu.memory_space<vmem>>, vector<64x128xf32>
    %17 = arith.truncf %16 : vector<64x128xf32> to vector<64x128xbf16>
    %c0_21 = arith.constant 0 : index
    %c0_22 = arith.constant 0 : index
    %c0_23 = arith.constant 0 : index
    %18 = vector.load %arg3[%c0_21, %c0_22, %c0_23] : memref<1x64x128xbf16, #tpu.memory_space<vmem>>, vector<1x64x128xbf16>
    %19 = vector.shape_cast %18 : vector<1x64x128xbf16> to vector<64x128xbf16>
    %20 = vector.shape_cast %17 : vector<64x128xbf16> to vector<1x64x128xbf16>
    tpu.vector_store %arg3[%c0_21, %c0_22, %c0_23], %20 {strides = array<i32>} : memref<1x64x128xbf16, #tpu.memory_space<vmem>>, vector<1x64x128xbf16>,
    %cst_24 = arith.constant dense<0.000000e+00> : vector<128xf32>
    %21 = vector.multi_reduction <add>, %16, %cst_24 [0] : vector<64x128xf32> to vector<128xf32>
    %22 = vector.shape_cast %21 : vector<128xf32> to vector<1x128xf32>
    %c0_25 = arith.constant 0 : index
    %c0_26 = arith.constant 0 : index
    %c0_27 = arith.constant 0 : index
    %23 = vector.load %arg4[%c0_25, %c0_26, %c0_27] : memref<1x2x128xf32, #tpu.memory_space<vmem>>, vector<1x1x128xf32>
    %24 = vector.shape_cast %23 : vector<1x1x128xf32> to vector<1x128xf32>
    %25 = vector.shape_cast %22 : vector<1x128xf32> to vector<1x1x128xf32>
    tpu.vector_store %arg4[%c0_25, %c0_26, %c0_27], %25 {strides = array<i32>} : memref<1x2x128xf32, #tpu.memory_space<vmem>>, vector<1x1x128xf32>,
    %26 = arith.mulf %16, %16 : vector<64x128xf32>
    %cst_28 = arith.constant dense<0.000000e+00> : vector<128xf32>
    %27 = vector.multi_reduction <add>, %26, %cst_28 [0] : vector<64x128xf32> to vector<128xf32>
    %28 = vector.shape_cast %27 : vector<128xf32> to vector<1x128xf32>
    %c0_29 = arith.constant 0 : index
    %c1_30 = arith.constant 1 : index
    %c0_31 = arith.constant 0 : index
    %29 = vector.load %arg4[%c0_29, %c1_30, %c0_31] : memref<1x2x128xf32, #tpu.memory_space<vmem>>, vector<1x1x128xf32>
    %30 = vector.shape_cast %29 : vector<1x1x128xf32> to vector<1x128xf32>
    %31 = vector.shape_cast %28 : vector<1x128xf32> to vector<1x1x128xf32>
    tpu.vector_store %arg4[%c0_29, %c1_30, %c0_31], %31 {strides = array<i32>} : memref<1x2x128xf32, #tpu.memory_space<vmem>>, vector<1x1x128xf32>,
    return
  }
  func.func @transform_0(%arg0: i32) -> (i32, i32, i32, i32) {
    %c0_i32 = arith.constant 0 : i32
    %c0_i32_0 = arith.constant 0 : i32
    %c0_i32_1 = arith.constant 0 : i32
    %c0_i32_2 = arith.constant 0 : i32
    return %arg0, %c0_i32, %c0_i32_0, %c0_i32_1 : i32, i32, i32, i32
  }
  func.func @transform_1(%arg0: i32) -> (i32, i32, i32) {
    %c0_i32 = arith.constant 0 : i32
    %c0_i32_0 = arith.constant 0 : i32
    %c0_i32_1 = arith.constant 0 : i32
    %c0_i32_2 = arith.constant 0 : i32
    return %c0_i32, %c0_i32_0, %c0_i32_1 : i32, i32, i32
  }
  func.func @transform_2(%arg0: i32) -> (i32, i32, i32) {
    %c0_i32 = arith.constant 0 : i32
    %c0_i32_0 = arith.constant 0 : i32
    %c0_i32_1 = arith.constant 0 : i32
    return %arg0, %c0_i32, %c0_i32_0 : i32, i32, i32
  }
  func.func @transform_3(%arg0: i32) -> (i32, i32, i32) {
    %c0_i32 = arith.constant 0 : i32
    %c0_i32_0 = arith.constant 0 : i32
    %c0_i32_1 = arith.constant 0 : i32
    return %arg0, %c0_i32, %c0_i32_0 : i32, i32, i32
  }
}

module attributes {stable_mosaic.version = 11 : i64} {
  func.func @bn_act_kernel(%arg0: i32, %arg1: memref<128x128xbf16, #tpu.memory_space<vmem>>, %arg2: memref<1x128xf32, #tpu.memory_space<vmem>>, %arg3: memref<1x128xf32, #tpu.memory_space<vmem>>, %arg4: memref<128x128xf32, #tpu.memory_space<vmem>>) attributes {dimension_semantics = [#tpu.dimension_semantics<parallel>], iteration_bounds = array<i64: 1>, scalar_prefetch = 0 : i64, scratch_operands = 0 : i64, tpu.core_type = #tpu.core_type<tc>, window_params = [{transform_indices = @transform_0, window_bounds = array<i64: 128, 128>}, {pipeline_mode = #tpu.pipeline_mode<synchronous>, transform_indices = @transform_1, window_bounds = array<i64: 1, 128>}, {pipeline_mode = #tpu.pipeline_mode<synchronous>, transform_indices = @transform_2, window_bounds = array<i64: 1, 128>}, {transform_indices = @transform_3, window_bounds = array<i64: 128, 128>}]} {
    %c0 = arith.constant 0 : index
    %c0_0 = arith.constant 0 : index
    %0 = vector.load %arg1[%c0, %c0_0] : memref<128x128xbf16, #tpu.memory_space<vmem>>, vector<128x128xbf16>
    %1 = arith.extf %0 : vector<128x128xbf16> to vector<128x128xf32>
    %c0_1 = arith.constant 0 : index
    %c0_2 = arith.constant 0 : index
    %2 = vector.load %arg2[%c0_1, %c0_2] : memref<1x128xf32, #tpu.memory_space<vmem>>, vector<1x128xf32>
    %3 = vector.broadcast %2 : vector<1x128xf32> to vector<128x128xf32>
    %4 = arith.mulf %1, %3 : vector<128x128xf32>
    %c0_3 = arith.constant 0 : index
    %c0_4 = arith.constant 0 : index
    %5 = vector.load %arg3[%c0_3, %c0_4] : memref<1x128xf32, #tpu.memory_space<vmem>>, vector<1x128xf32>
    %6 = vector.broadcast %5 : vector<1x128xf32> to vector<128x128xf32>
    %7 = arith.addf %4, %6 : vector<128x128xf32>
    %cst = arith.constant 0.000000e+00 : f32
    %8 = vector.broadcast %cst : f32 to vector<128x128xf32>
    %9 = arith.cmpf oge, %7, %8 : vector<128x128xf32>
    %cst_5 = arith.constant 2.000000e-01 : f32
    %10 = vector.broadcast %cst_5 : f32 to vector<128x128xf32>
    %11 = arith.mulf %10, %7 : vector<128x128xf32>
    %12 = arith.select %9, %7, %11 : vector<128x128xi1>, vector<128x128xf32>
    %c0_6 = arith.constant 0 : index
    %c0_7 = arith.constant 0 : index
    %13 = vector.load %arg4[%c0_6, %c0_7] : memref<128x128xf32, #tpu.memory_space<vmem>>, vector<128x128xf32>
    tpu.vector_store %arg4[%c0_6, %c0_7], %12 {strides = array<i32>} : memref<128x128xf32, #tpu.memory_space<vmem>>, vector<128x128xf32>,
    return
  }
  func.func @transform_0(%arg0: i32) -> (i32, i32) {
    %c0_i32 = arith.constant 0 : i32
    %c0_i32_0 = arith.constant 0 : i32
    return %arg0, %c0_i32 : i32, i32
  }
  func.func @transform_1(%arg0: i32) -> (i32, i32) {
    %c0_i32 = arith.constant 0 : i32
    %c0_i32_0 = arith.constant 0 : i32
    %c0_i32_1 = arith.constant 0 : i32
    return %c0_i32, %c0_i32_0 : i32, i32
  }
  func.func @transform_2(%arg0: i32) -> (i32, i32) {
    %c0_i32 = arith.constant 0 : i32
    %c0_i32_0 = arith.constant 0 : i32
    %c0_i32_1 = arith.constant 0 : i32
    return %c0_i32, %c0_i32_0 : i32, i32
  }
  func.func @transform_3(%arg0: i32) -> (i32, i32) {
    %c0_i32 = arith.constant 0 : i32
    %c0_i32_0 = arith.constant 0 : i32
    return %arg0, %c0_i32 : i32, i32
  }
}

</mosaic_0001>

<llo_original>
// kernel: cnn_block_pallas.3
$region0: #{cnn_block_pallas.3}
  #allocation0 [shape = 'u32[]', space=smem, size = 0x4, offset = 0x4, fixed_abs, tag = 'smem constant byte address 0x4 - core index']
  #allocation1 [shape = 'u32[144,128]{1,0:T(1,128)}', space=vmem, size = 0x12000, scoped, tag = 'internal scratch']
  %s0 = inlined_call_operand.vmem [shape: bf16[128,128], index: 0, kind: input, shape index: {}]
  %s1 = inlined_call_operand.vmem [shape: f32[1,128], index: 1, kind: input, shape index: {}]
  %s2 = inlined_call_operand.vmem [shape: f32[1,128], index: 2, kind: input, shape index: {}]
  %s3 = inlined_call_operand.vmem [shape: f32[128,128], index: 3, kind: output, shape index: {}]
  %s4 = sld [smem:[#allocation0]]
  $region22: #{cnn_block_pallas.3} parent=0
    _
  %s6 = ssub.s32 1, %s4
  %s7 = scalar_select 0, %s6, %s4
  // Predicated region
  $region2: #{cnn_block_pallas.3} parent=0 // pred_check
    _
  $region3: #{cnn_block_pallas.3} parent=0 // pred_check_branch
    %9 = sbr.rel (0) target = $region5
  $region4: #{cnn_block_pallas.3} parent=0 // pred_region
    _
  $region5: #{cnn_block_pallas.3} parent=0 // pred_fallthru
    _
  // Predicated region
  $region6: #{cnn_block_pallas.3} parent=0 // pred_check
    _
  $region7: #{cnn_block_pallas.3} parent=0 // pred_check_branch
    %11 = sbr.rel (0) target = $region9
  $region8: #{cnn_block_pallas.3} parent=0 // pred_region
    _
  $region9: #{cnn_block_pallas.3} parent=0 // pred_fallthru
    _
  // Predicated region
  $region10: #{cnn_block_pallas.3} parent=0 // pred_check
    _
  $region11: #{cnn_block_pallas.3} parent=0 // pred_check_branch
    %13 = sbr.rel (0) target = $region13
  $region12: #{cnn_block_pallas.3} parent=0 // pred_region
    _
  $region13: #{cnn_block_pallas.3} parent=0 // pred_fallthru
    _
  %v14 = vld [vmem:[%s0] sm:$0xf]
  %v15 = vld [vmem:[%s0 + $0x4] sm:$0xf]
  %v16 = vld [vmem:[%s0 + $0x8] sm:$0xf]
  %v17 = vld [vmem:[%s0 + $0xc] sm:$0xf]
  %v18 = vld [vmem:[%s0 + $0x10] sm:$0xf]
  %v19 = vld [vmem:[%s0 + $0x14] sm:$0xf]
  %v20 = vld [vmem:[%s0 + $0x18] sm:$0xf]
  %v21 = vld [vmem:[%s0 + $0x1c] sm:$0xf]
  %v22 = vld [vmem:[%s0 + $0x20] sm:$0xf]
  %v23 = vld [vmem:[%s0 + $0x24] sm:$0xf]
  %v24 = vld [vmem:[%s0 + $0x28] sm:$0xf]
  %v25 = vld [vmem:[%s0 + $0x2c] sm:$0xf]
  %v26 = vld [vmem:[%s0 + $0x30] sm:$0xf]
  %v27 = vld [vmem:[%s0 + $0x34] sm:$0xf]
  %v28 = vld [vmem:[%s0 + $0x38] sm:$0xf]
  %v29 = vld [vmem:[%s0 + $0x3c] sm:$0xf]
  %v30 = vunpack.c.l.bf16 %v14
  %v31 = vunpack.c.l.bf16 %v15
  %v32 = vunpack.c.l.bf16 %v16
  %v33 = vunpack.c.l.bf16 %v17
  %v34 = vunpack.c.l.bf16 %v18
  %v35 = vunpack.c.l.bf16 %v19
  %v36 = vunpack.c.l.bf16 %v20
  %v37 = vunpack.c.l.bf16 %v21
  %v38 = vunpack.c.l.bf16 %v22
  %v39 = vunpack.c.l.bf16 %v23
  %v40 = vunpack.c.l.bf16 %v24
  %v41 = vunpack.c.l.bf16 %v25
  %v42 = vunpack.c.l.bf16 %v26
  %v43 = vunpack.c.l.bf16 %v27
  %v44 = vunpack.c.l.bf16 %v28
  %v45 = vunpack.c.l.bf16 %v29
  %v46 = vld [vmem:[%s1] sm:$0x1]
  %v48 = vlaneseq
  %v49 = vshrl.u32 %v48, 7
  %v50 = vsub.s32 0, %v49
  %v51 = vrot.slane %v46, %v50
  %v53 = vmul.f32 %v30, %v51
  %v54 = vmul.f32 %v31, %v51
  %v55 = vmul.f32 %v32, %v51
  %v56 = vmul.f32 %v33, %v51
  %v57 = vmul.f32 %v34, %v51
  %v58 = vmul.f32 %v35, %v51
  %v59 = vmul.f32 %v36, %v51
  %v60 = vmul.f32 %v37, %v51
  %v61 = vmul.f32 %v38, %v51
  %v62 = vmul.f32 %v39, %v51
  %v63 = vmul.f32 %v40, %v51
  %v64 = vmul.f32 %v41, %v51
  %v65 = vmul.f32 %v42, %v51
  %v66 = vmul.f32 %v43, %v51
  %v67 = vmul.f32 %v44, %v51
  %v68 = vmul.f32 %v45, %v51
  %v69 = vld [vmem:[%s2] sm:$0x1]
  %v71 = vlaneseq
  %v72 = vshrl.u32 %v71, 7
  %v73 = vsub.s32 0, %v72
  %v74 = vrot.slane %v69, %v73
  %v76 = vadd.f32 %v53, %v74
  %v77 = vadd.f32 %v54, %v74
  %v78 = vadd.f32 %v55, %v74
  %v79 = vadd.f32 %v56, %v74
  %v80 = vadd.f32 %v57, %v74
  %v81 = vadd.f32 %v58, %v74
  %v82 = vadd.f32 %v59, %v74
  %v83 = vadd.f32 %v60, %v74
  %v84 = vadd.f32 %v61, %v74
  %v85 = vadd.f32 %v62, %v74
  %v86 = vadd.f32 %v63, %v74
  %v87 = vadd.f32 %v64, %v74
  %v88 = vadd.f32 %v65, %v74
  %v89 = vadd.f32 %v66, %v74
  %v90 = vadd.f32 %v67, %v74
  %v91 = vadd.f32 %v68, %v74
  %vm92 = vcmp.ge.f32.partialorder %v76, 0.0
  %vm93 = vcmp.ge.f32.partialorder %v77, 0.0
  %vm94 = vcmp.ge.f32.partialorder %v78, 0.0
  %vm95 = vcmp.ge.f32.partialorder %v79, 0.0
  %vm96 = vcmp.ge.f32.partialorder %v80, 0.0
  %vm97 = vcmp.ge.f32.partialorder %v81, 0.0
  %vm98 = vcmp.ge.f32.partialorder %v82, 0.0
  %vm99 = vcmp.ge.f32.partialorder %v83, 0.0
  %vm100 = vcmp.ge.f32.partialorder %v84, 0.0
  %vm101 = vcmp.ge.f32.partialorder %v85, 0.0
  %vm102 = vcmp.ge.f32.partialorder %v86, 0.0
  %vm103 = vcmp.ge.f32.partialorder %v87, 0.0
  %vm104 = vcmp.ge.f32.partialorder %v88, 0.0
  %vm105 = vcmp.ge.f32.partialorder %v89, 0.0
  %vm106 = vcmp.ge.f32.partialorder %v90, 0.0
  %vm107 = vcmp.ge.f32.partialorder %v91, 0.0
  %v108 = vmul.f32 %v76, 0.2
  %v109 = vmul.f32 %v77, 0.2
  %v110 = vmul.f32 %v78, 0.2
  %v111 = vmul.f32 %v79, 0.2
  %v112 = vmul.f32 %v80, 0.2
  %v113 = vmul.f32 %v81, 0.2
  %v114 = vmul.f32 %v82, 0.2
  %v115 = vmul.f32 %v83, 0.2
  %v116 = vmul.f32 %v84, 0.2
  %v117 = vmul.f32 %v85, 0.2
  %v118 = vmul.f32 %v86, 0.2
  %v119 = vmul.f32 %v87, 0.2
  %v120 = vmul.f32 %v88, 0.2
  %v121 = vmul.f32 %v89, 0.2
  %v122 = vmul.f32 %v90, 0.2
  %v123 = vmul.f32 %v91, 0.2
  %v124 = vsel %vm92, %v76, %v108
  %v125 = vsel %vm93, %v77, %v109
  %v126 = vsel %vm94, %v78, %v110
  %v127 = vsel %vm95, %v79, %v111
  %v128 = vsel %vm96, %v80, %v112
  %v129 = vsel %vm97, %v81, %v113
  %v130 = vsel %vm98, %v82, %v114
  %v131 = vsel %vm99, %v83, %v115
  %v132 = vsel %vm100, %v84, %v116
  %v133 = vsel %vm101, %v85, %v117
  %v134 = vsel %vm102, %v86, %v118
  %v135 = vsel %vm103, %v87, %v119
  %v136 = vsel %vm104, %v88, %v120
  %v137 = vsel %vm105, %v89, %v121
  %v138 = vsel %vm106, %v90, %v122
  %v139 = vsel %vm107, %v91, %v123
  %140 = vst [vmem:[%s3] sm:$0xff] %v124
  %141 = vst [vmem:[%s3 + $0x8] sm:$0xff] %v125
  %142 = vst [vmem:[%s3 + $0x10] sm:$0xff] %v126
  %143 = vst [vmem:[%s3 + $0x18] sm:$0xff] %v127
  %144 = vst [vmem:[%s3 + $0x20] sm:$0xff] %v128
  %145 = vst [vmem:[%s3 + $0x28] sm:$0xff] %v129
  %146 = vst [vmem:[%s3 + $0x30] sm:$0xff] %v130
  %147 = vst [vmem:[%s3 + $0x38] sm:$0xff] %v131
  %148 = vst [vmem:[%s3 + $0x40] sm:$0xff] %v132
  %149 = vst [vmem:[%s3 + $0x48] sm:$0xff] %v133
  %150 = vst [vmem:[%s3 + $0x50] sm:$0xff] %v134
  %151 = vst [vmem:[%s3 + $0x58] sm:$0xff] %v135
  %152 = vst [vmem:[%s3 + $0x60] sm:$0xff] %v136
  %153 = vst [vmem:[%s3 + $0x68] sm:$0xff] %v137
  %154 = vst [vmem:[%s3 + $0x70] sm:$0xff] %v138
  %155 = vst [vmem:[%s3 + $0x78] sm:$0xff] %v139
  // Predicated region
  $region14: #{cnn_block_pallas.3} parent=0 // pred_check
    _
  $region15: #{cnn_block_pallas.3} parent=0 // pred_check_branch
    %157 = sbr.rel (0) target = $region17
  $region16: #{cnn_block_pallas.3} parent=0 // pred_region
    _
  $region17: #{cnn_block_pallas.3} parent=0 // pred_fallthru
    _
  // Predicated region
  $region18: #{cnn_block_pallas.3} parent=0 // pred_check
    _
  $region19: #{cnn_block_pallas.3} parent=0 // pred_check_branch
    %159 = sbr.rel (0) target = $region21
  $region20: #{cnn_block_pallas.3} parent=0 // pred_region
    _
  $region21: #{cnn_block_pallas.3} parent=0 // pred_fallthru
    _

// kernel: cnn_block_pallas.2
$region0: #{cnn_block_pallas.2}
  #allocation0 [shape = 'u32[]', space=smem, size = 0x4, offset = 0x4, fixed_abs, tag = 'smem constant byte address 0x4 - core index']
  #allocation1 [shape = 'u32[144,128]{1,0:T(1,128)}', space=vmem, size = 0x12000, scoped, tag = 'internal scratch']
  #allocation2 [shape = 'f32[64,128]{1,0:T(8,128)}', space=vmem, size = 0x8000, scoped, tag = 'scratch operand']
  %s0 = inlined_call_operand.vmem [shape: bf16[2,9,8,32], index: 0, kind: input, shape index: {}]
  %s1 = inlined_call_operand.vmem [shape: bf16[2,32,128], index: 1, kind: input, shape index: {}]
  %s2 = inlined_call_operand.vmem [shape: bf16[2,64,128], index: 2, kind: output, shape index: {0}]
  %s3 = inlined_call_operand.vmem [shape: f32[2,2,128], index: 3, kind: output, shape index: {1}]
  %4 = xla_tuple %s2, %s3
  %s5 = sld [smem:[#allocation0]]
  $region49: #{cnn_block_pallas.2} parent=0
    _
  %s7 = ssub.s32 1, %s5
  %s8 = scalar_select 0, %s7, %s5
  loop: start=0, step=1, limit=4
  $region2: #{cnn_block_pallas.2} parent=0 // loop_pre_header
    _
  $region3: #{cnn_block_pallas.2} parent=0 // loop_header
    %s10 = sphi 0, %s14
    %p11 = scmp.ge.s32.totalorder %s10, 4
    %s20 = sphi 0, %s22
    %s23 = sphi 0, %s20
    %s24 = sphi 0, %s23
    %s40 = sphi 0, %s24
    %s44 = sphi 0, %s44
    %s46 = sphi 0, %s44
    %s47 = sphi 0, %s46
    %s61 = sphi 0, %s47
    %s67 = sphi 0, %s69
    %s70 = sphi 0, %s67
    %s71 = sphi 0, %s70
    %s87 = sphi 0, %s71
    %s93 = sphi 0, %s95
    %s96 = sphi 0, %s93
    %s97 = sphi 0, %s96
    %s113 = sphi 0, %s97
  $region4: #{cnn_block_pallas.2} parent=0 // loop_header_branch
    %13 = sbr.rel (%p11) target = $region8
  $region5: #{cnn_block_pallas.2} parent=0 // loop_body
    %s15 = ssub.s32 %s10, 1
    %s16 = ssub.s32 %s10, 2
    %s17 = sadd.s32 %s10, 1
    %s18 = ssub.s32 %s10, %s17
    %p19 = scmp.eq.s32.totalorder %s18, 0
    %s21 = sadd.s32 %s20, 1
    %s22 = scalar_select %p19, %s20, %s21
    %p25 = pneg %p19
    %p26 = scmp.eq.s32.totalorder %s10, 1
    %p27 = por %p25, %p26
    %p28 = scmp.ne.s32.totalorder %s20, %s23
    %p29 = scmp.eq.s32.totalorder %s10, 0
    %p30 = por %p28, %p29
    %p31 = scmp.ne.s32.totalorder %s20, %s23
    %p32 = scmp.eq.s32.totalorder %s15, 1
    %p33 = por %p31, %p32
    %p34 = scmp.ne.s32.totalorder %s23, %s24
    %p35 = scmp.eq.s32.totalorder %s15, 0
    %p36 = por %p34, %p35
    %p37 = scmp.ne.s32.totalorder %s23, %s24
    %p38 = scmp.eq.s32.totalorder %s16, 1
    %p39 = por %p37, %p38
    %p41 = scmp.ne.s32.totalorder %s24, %s40
    %p42 = scmp.eq.s32.totalorder %s16, 0
    %p43 = por %p41, %p42
    %s45 = sadd.s32 %s44, 1
    %p48 = scmp.eq.s32.totalorder %s10, 1
    %p49 = scmp.ne.s32.totalorder %s44, %s46
    %p50 = scmp.eq.s32.totalorder %s10, 0
    %p51 = por %p49, %p50
    %p52 = scmp.ne.s32.totalorder %s44, %s46
    %p53 = scmp.eq.s32.totalorder %s15, 1
    %p54 = por %p52, %p53
    %p55 = scmp.ne.s32.totalorder %s46, %s47
    %p56 = scmp.eq.s32.totalorder %s15, 0
    %p57 = por %p55, %p56
    %p58 = scmp.ne.s32.totalorder %s46, %s47
    %p59 = scmp.eq.s32.totalorder %s16, 1
    %p60 = por %p58, %p59
    %p62 = scmp.ne.s32.totalorder %s47, %s61
    %p63 = scmp.eq.s32.totalorder %s16, 0
    %p64 = por %p62, %p63
    %s65 = ssub.s32 %s10, %s17
    %p66 = scmp.eq.s32.totalorder %s65, 0
    %s68 = sadd.s32 %s67, 1
    %s69 = scalar_select %p66, %s67, %s68
    %p72 = pneg %p66
    %p73 = scmp.eq.s32.totalorder %s10, 1
    %p74 = por %p72, %p73
    %p75 = scmp.ne.s32.totalorder %s67, %s70
    %p76 = scmp.eq.s32.totalorder %s10, 0
    %p77 = por %p75, %p76
    %p78 = scmp.ne.s32.totalorder %s67, %s70
    %p79 = scmp.eq.s32.totalorder %s15, 1
    %p80 = por %p78, %p79
    %p81 = scmp.ne.s32.totalorder %s70, %s71
    %p82 = scmp.eq.s32.totalorder %s15, 0
    %p83 = por %p81, %p82
    %p84 = scmp.ne.s32.totalorder %s70, %s71
    %p85 = scmp.eq.s32.totalorder %s16, 1
    %p86 = por %p84, %p85
    %p88 = scmp.ne.s32.totalorder %s71, %s87
    %p89 = scmp.eq.s32.totalorder %s16, 0
    %p90 = por %p88, %p89
    %s91 = ssub.s32 %s10, %s17
    %p92 = scmp.eq.s32.totalorder %s91, 0
    %s94 = sadd.s32 %s93, 1
    %s95 = scalar_select %p92, %s93, %s94
    %p98 = pneg %p92
    %p99 = scmp.eq.s32.totalorder %s10, 1
    %p100 = por %p98, %p99
    %p101 = scmp.ne.s32.totalorder %s93, %s96
    %p102 = scmp.eq.s32.totalorder %s10, 0
    %p103 = por %p101, %p102
    %p104 = scmp.ne.s32.totalorder %s93, %s96
    %p105 = scmp.eq.s32.totalorder %s15, 1
    %p106 = por %p104, %p105
    %p107 = scmp.ne.s32.totalorder %s96, %s97
    %p108 = scmp.eq.s32.totalorder %s15, 0
    %p109 = por %p107, %p108
    %p110 = scmp.ne.s32.totalorder %s96, %s97
    %p111 = scmp.eq.s32.totalorder %s16, 1
    %p112 = por %p110, %p111
    %p114 = scmp.ne.s32.totalorder %s97, %s113
    %p115 = scmp.eq.s32.totalorder %s16, 0
    %p116 = por %p114, %p115
    %p117 = scmp.le.s32.totalorder 1, %s10
    %p118 = scmp.lt.s32.totalorder %s10, 3
    %p119 = pnand %p117, %p118
    %p120 = pneg %p119
    // Predicated region
    $region9: #{cnn_block_pallas.2} parent=5 // pred_check
      _
    $region10: #{cnn_block_pallas.2} parent=5 // pred_check_branch
      %122 = sbr.rel (%p119) target = $region12
    $region11: #{cnn_block_pallas.2} parent=5 // pred_region
      %s123 = ssub.s32 %s10, 1
      // Predicated region
      $region13: #{cnn_block_pallas.2} parent=11 // pred_check
        %p124 = pneg %p57
      $region14: #{cnn_block_pallas.2} parent=11 // pred_check_branch
        %126 = sbr.rel (%p124) target = $region16
      $region15: #{cnn_block_pallas.2} parent=11 // pred_region
        _
      $region16: #{cnn_block_pallas.2} parent=11 // pred_fallthru
        _
    $region12: #{cnn_block_pallas.2} parent=5 // pred_fallthru
      _
    %p127 = scmp.lt.s32.totalorder %s10, 2
    // Predicated region
    $region17: #{cnn_block_pallas.2} parent=5 // pred_check
      %p128 = pneg %p127
    $region18: #{cnn_block_pallas.2} parent=5 // pred_check_branch
      %130 = sbr.rel (%p128) target = $region20
    $region19: #{cnn_block_pallas.2} parent=5 // pred_region
      // Predicated region
      $region21: #{cnn_block_pallas.2} parent=19 // pred_check
        %p131 = pneg %p30
      $region22: #{cnn_block_pallas.2} parent=19 // pred_check_branch
        %133 = sbr.rel (%p131) target = $region24
      $region23: #{cnn_block_pallas.2} parent=19 // pred_region
        %p134 = scmp.lt.s32.totalorder %s10, 1
        %s135 = scalar_select %p134, %s10, 1
        %s136 = smul.addr %s135, 9
        %s137 = smul.addr %s136, 4
        %s138 = scalar_lea.vmem %s0, %s137
      $region24: #{cnn_block_pallas.2} parent=19 // pred_fallthru
        _
    $region20: #{cnn_block_pallas.2} parent=5 // pred_fallthru
      _
    %p139 = scmp.le.s32.totalorder 1, %s10
    %p140 = scmp.lt.s32.totalorder %s10, 3
    %p141 = pnand %p139, %p140
    %p142 = pneg %p141
    // Predicated region
    $region25: #{cnn_block_pallas.2} parent=5 // pred_check
      _
    $region26: #{cnn_block_pallas.2} parent=5 // pred_check_branch
      %144 = sbr.rel (%p141) target = $region28
    $region27: #{cnn_block_pallas.2} parent=5 // pred_region
      %s145 = ssub.s32 %s10, 1
      %p146 = scmp.lt.s32.totalorder %s15, 1
      %s147 = scalar_select %p146, %s15, 1
      %s148 = smul.addr %s147, 9
      %s149 = smul.addr %s148, 4
      %s150 = scalar_lea.vmem %s0, %s149
      %p151 = pneg %p36
      %p152 = pneg %p33
      %p153 = pneg %p57
      %p154 = pneg %p54
      %p155 = pneg %p83
      %p156 = pneg %p80
      %p157 = scmp.lt.s32.totalorder %s15, 1
      %s158 = scalar_select %p157, %s15, 1
      %s159 = smul.addr %s158, 8
      %s160 = smul.addr %s159, 4
      %s161 = scalar_lea.vmem %s2, %s160
      %p162 = pneg %p109
      %p163 = pneg %p106
      %p164 = scmp.lt.s32.totalorder %s15, 1
      %s165 = scalar_select %p164, %s15, 1
      %s166 = smul.addr %s165, 2
      %s167 = scalar_lea.vmem %s3, %s166
      %p168 = scmp.lt.s32.totalorder %s15, 1
      %s169 = scalar_select %p168, %s15, 1
      %s170 = smul.addr %s169, 9
      %s171 = smul.addr %s170, 4
      %s172 = scalar_lea.vmem %s0, %s171
      %p173 = scmp.lt.s32.totalorder %s15, 1
      %s174 = scalar_select %p173, %s15, 1
      %s175 = smul.addr %s174, 8
      %s176 = smul.addr %s175, 4
      %s177 = scalar_lea.vmem %s2, %s176
      %p178 = scmp.lt.s32.totalorder %s15, 1
      %s179 = scalar_select %p178, %s15, 1
      %s180 = smul.addr %s179, 2
      %s181 = scalar_lea.vmem %s3, %s180
      %v183 = vld [vmem:[%s172] sm:$0xf]
      %v184 = vld [vmem:[%s172 + $0x4] sm:$0xf]
      %v185 = vld [vmem:[%s172 + $0x8] sm:$0xf]
      %v186 = vld [vmem:[%s172 + $0xc] sm:$0xf]
      %v187 = vld [vmem:[%s172 + $0x10] sm:$0xf]
      %v188 = vld [vmem:[%s172 + $0x14] sm:$0xf]
      %v189 = vld [vmem:[%s172 + $0x18] sm:$0xf]
      %v190 = vld [vmem:[%s172 + $0x1c] sm:$0xf]
      %v191 = vld [vmem:[%s1] sm:$0xf]
      %v192 = vld [vmem:[%s1 + $0x4] sm:$0xf]
      %v193 = vld [vmem:[%s1 + $0x8] sm:$0xf]
      %v194 = vld [vmem:[%s1 + $0xc] sm:$0xf]
      %v203 = vunpack.c.l.b16 %v183
      %v204 = vunpack.c.l.b16 %v184
      %v205 = vunpack.c.l.b16 %v185
      %v206 = vunpack.c.l.b16 %v186
      %v207 = vunpack.c.l.b16 %v187
      %v208 = vunpack.c.l.b16 %v188
      %v209 = vunpack.c.l.b16 %v189
      %v210 = vunpack.c.l.b16 %v190
      %v211 = vpack.c.b16 %v204, %v203
      %v212 = vpack.c.b16 %v206, %v205
      %v213 = vpack.c.b16 %v208, %v207
      %v214 = vpack.c.b16 %v210, %v209
      %v219 = vunpack.c.l.b16 %v191
      %v220 = vunpack.c.l.b16 %v192
      %v221 = vunpack.c.l.b16 %v193
      %v222 = vunpack.c.l.b16 %v194
      %v223 = vpack.c.b16 %v220, %v219
      %v224 = vpack.c.b16 %v222, %v221
      %vm227 = vcmask 261120
      %v229 = vsel %vm227, %v211, 0
      %v232 = vsel %vm227, %v212, 0
      %v235 = vsel %vm227, %v213, 0
      %v238 = vsel %vm227, %v214, 0
      %240 = vmatprep.subr.bf16.mxu0 0
      %241 = vmatpush1.bf16.msra.mxu0 0
      %242 = vmatprep.subr.bf16.mxu0 0
      %243 = vmatpush1.bf16.msra.mxu0 0
      %244 = vmatprep.subr.bf16.mxu0 0
      %245 = vmatpush1.bf16.msra.mxu0 0
      %246 = vmatprep.subr.bf16.mxu0 0
      %247 = vmatpush1.bf16.msra.mxu0 0
      %248 = vmatprep.subr.bf16.mxu0 0
      %249 = vmatpush1.bf16.msra.mxu0 0
      %250 = vmatprep.subr.bf16.mxu0 0
      %251 = vmatpush1.bf16.msra.mxu0 0
      %252 = vmatprep.subr.bf16.mxu0 0
      %253 = vmatpush1.bf16.msra.mxu0 %v224
      %254 = vmatprep.subr.bf16.mxu0 0
      %255 = vmatpush1.bf16.msra.mxu0 %v223
      %256 = vmatprep.subr.bf16.mxu0 0
      %257 = vmatpush2.bf16.msra.mxu0 0
      %258 = vmatprep.subr.bf16.mxu0 0
      %259 = vmatpush2.bf16.msra.mxu0 0
      %260 = vmatprep.subr.bf16.mxu0 0
      %261 = vmatpush2.bf16.msra.mxu0 0
      %262 = vmatprep.subr.bf16.mxu0 0
      %263 = vmatpush2.bf16.msra.mxu0 0
      %264 = vmatprep.subr.bf16.mxu0 0
      %265 = vmatpush2.bf16.msra.mxu0 0
      %266 = vmatprep.subr.bf16.mxu0 0
      %267 = vmatpush2.bf16.msra.mxu0 0
      %268 = vmatprep.subr.bf16.mxu0 0
      %269 = vmatpush2.bf16.msra.mxu0 0
      %270 = vmatprep.subr.bf16.mxu0 0
      %271 = vmatpush2.bf16.msra.mxu0 0
      %272 = vmatprep.mubr.bf16.mxu0 0
      %273 = vmatmul.mubr.bf16.gmra.mxu0 %v229
      %v274 = vpop.f32.mrf.mxu0
      %v275 = vadd.f32 0.0, %v274
      %v276 = vpop.f32.mrf.mxu0
      %v277 = vpop.f32.mrf.mxu0
      %v278 = vadd.f32 0.0, %v277
      %v279 = vpop.f32.mrf.mxu0
      %280 = vmatprep.mubr.bf16.mxu0 0
      %281 = vmatmul.mubr.bf16.gmra.mxu0 %v232
      %v282 = vpop.f32.mrf.mxu0
      %v283 = vadd.f32 0.0, %v282
      %v284 = vpop.f32.mrf.mxu0
      %v285 = vpop.f32.mrf.mxu0
      %v286 = vadd.f32 0.0, %v285
      %v287 = vpop.f32.mrf.mxu0
      %288 = vmatprep.mubr.bf16.mxu0 0
      %289 = vmatmul.mubr.bf16.gmra.mxu0 %v235
      %v290 = vpop.f32.mrf.mxu0
      %v291 = vadd.f32 0.0, %v290
      %v292 = vpop.f32.mrf.mxu0
      %v293 = vpop.f32.mrf.mxu0
      %v294 = vadd.f32 0.0, %v293
      %v295 = vpop.f32.mrf.mxu0
      %296 = vmatprep.mubr.bf16.mxu0 0
      %297 = vmatmul.mubr.bf16.gmra.mxu0 %v238
      %v298 = vpop.f32.mrf.mxu0
      %v299 = vadd.f32 0.0, %v298
      %v300 = vpop.f32.mrf.mxu0
      %v301 = vpop.f32.mrf.mxu0
      %v302 = vadd.f32 0.0, %v301
      %v303 = vpop.f32.mrf.mxu0
      %304 = vdwg.mxu0
      %305 = vst [vmem:[#allocation2] sm:$0xff] %v275
      %306 = vst [vmem:[#allocation2 + $0x8] sm:$0xff] %v278
      %307 = vst [vmem:[#allocation2 + $0x10] sm:$0xff] %v283
      %308 = vst [vmem:[#allocation2 + $0x18] sm:$0xff] %v286
      %309 = vst [vmem:[#allocation2 + $0x20] sm:$0xff] %v291
      %310 = vst [vmem:[#allocation2 + $0x28] sm:$0xff] %v294
      %311 = vst [vmem:[#allocation2 + $0x30] sm:$0xff] %v299
      %312 = vst [vmem:[#allocation2 + $0x38] sm:$0xff] %v302
      %s313 = scalar_lea.vmem %s172, 4
      %v314 = vld [vmem:[%s313] sm:$0xf]
      %v315 = vld [vmem:[%s313 + $0x4] sm:$0xf]
      %v316 = vld [vmem:[%s313 + $0x8] sm:$0xf]
      %v317 = vld [vmem:[%s313 + $0xc] sm:$0xf]
      %v318 = vld [vmem:[%s313 + $0x10] sm:$0xf]
      %v319 = vld [vmem:[%s313 + $0x14] sm:$0xf]
      %v320 = vld [vmem:[%s313 + $0x18] sm:$0xf]
      %v321 = vld [vmem:[%s313 + $0x1c] sm:$0xf]
      %s322 = scalar_lea.vmem %s1, 16
      %v323 = vld [vmem:[%s322] sm:$0xf]
      %v324 = vld [vmem:[%s322 + $0x4] sm:$0xf]
      %v325 = vld [vmem:[%s322 + $0x8] sm:$0xf]
      %v326 = vld [vmem:[%s322 + $0xc] sm:$0xf]
      %v335 = vunpack.c.l.b16 %v314
      %v336 = vunpack.c.l.b16 %v315
      %v337 = vunpack.c.l.b16 %v316
      %v338 = vunpack.c.l.b16 %v317
      %v339 = vunpack.c.l.b16 %v318
      %v340 = vunpack.c.l.b16 %v319
      %v341 = vunpack.c.l.b16 %v320
      %v342 = vunpack.c.l.b16 %v321
      %v343 = vpack.c.b16 %v336, %v335
      %v344 = vpack.c.b16 %v338, %v337
      %v345 = vpack.c.b16 %v340, %v339
      %v346 = vpack.c.b16 %v342, %v341
      %v351 = vunpack.c.l.b16 %v323
      %v352 = vunpack.c.l.b16 %v324
      %v353 = vunpack.c.l.b16 %v325
      %v354 = vunpack.c.l.b16 %v326
      %v355 = vpack.c.b16 %v352, %v351
      %v356 = vpack.c.b16 %v354, %v353
      %v360 = vsel %vm227, %v343, 0
      %v363 = vsel %vm227, %v344, 0
      %v366 = vsel %vm227, %v345, 0
      %v369 = vsel %vm227, %v346, 0
      %371 = vmatprep.subr.bf16.mxu0 0
      %372 = vmatpush1.bf16.msra.mxu0 0
      %373 = vmatprep.subr.bf16.mxu0 0
      %374 = vmatpush1.bf16.msra.mxu0 0
      %375 = vmatprep.subr.bf16.mxu0 0
      %376 = vmatpush1.bf16.msra.mxu0 0
      %377 = vmatprep.subr.bf16.mxu0 0
      %378 = vmatpush1.bf16.msra.mxu0 0
      %379 = vmatprep.subr.bf16.mxu0 0
      %380 = vmatpush1.bf16.msra.mxu0 0
      %381 = vmatprep.subr.bf16.mxu0 0
      %382 = vmatpush1.bf16.msra.mxu0 0
      %383 = vmatprep.subr.bf16.mxu0 0
      %384 = vmatpush1.bf16.msra.mxu0 %v356
      %385 = vmatprep.subr.bf16.mxu0 0
      %386 = vmatpush1.bf16.msra.mxu0 %v355
      %387 = vmatprep.subr.bf16.mxu0 0
      %388 = vmatpush2.bf16.msra.mxu0 0
      %389 = vmatprep.subr.bf16.mxu0 0
      %390 = vmatpush2.bf16.msra.mxu0 0
      %391 = vmatprep.subr.bf16.mxu0 0
      %392 = vmatpush2.bf16.msra.mxu0 0
      %393 = vmatprep.subr.bf16.mxu0 0
      %394 = vmatpush2.bf16.msra.mxu0 0
      %395 = vmatprep.subr.bf16.mxu0 0
      %396 = vmatpush2.bf16.msra.mxu0 0
      %397 = vmatprep.subr.bf16.mxu0 0
      %398 = vmatpush2.bf16.msra.mxu0 0
      %399 = vmatprep.subr.bf16.mxu0 0
      %400 = vmatpush2.bf16.msra.mxu0 0
      %401 = vmatprep.subr.bf16.mxu0 0
      %402 = vmatpush2.bf16.msra.mxu0 0
      %403 = vmatprep.mubr.bf16.mxu0 0
      %404 = vmatmul.mubr.bf16.gmra.mxu0 %v360
      %v405 = vpop.f32.mrf.mxu0
      %v406 = vadd.f32 0.0, %v405
      %v407 = vpop.f32.mrf.mxu0
      %v408 = vpop.f32.mrf.mxu0
      %v409 = vadd.f32 0.0, %v408
      %v410 = vpop.f32.mrf.mxu0
      %411 = vmatprep.mubr.bf16.mxu0 0
      %412 = vmatmul.mubr.bf16.gmra.mxu0 %v363
      %v413 = vpop.f32.mrf.mxu0
      %v414 = vadd.f32 0.0, %v413
      %v415 = vpop.f32.mrf.mxu0
      %v416 = vpop.f32.mrf.mxu0
      %v417 = vadd.f32 0.0, %v416
      %v418 = vpop.f32.mrf.mxu0
      %419 = vmatprep.mubr.bf16.mxu0 0
      %420 = vmatmul.mubr.bf16.gmra.mxu0 %v366
      %v421 = vpop.f32.mrf.mxu0
      %v422 = vadd.f32 0.0, %v421
      %v423 = vpop.f32.mrf.mxu0
      %v424 = vpop.f32.mrf.mxu0
      %v425 = vadd.f32 0.0, %v424
      %v426 = vpop.f32.mrf.mxu0
      %427 = vmatprep.mubr.bf16.mxu0 0
      %428 = vmatmul.mubr.bf16.gmra.mxu0 %v369
      %v429 = vpop.f32.mrf.mxu0
      %v430 = vadd.f32 0.0, %v429
      %v431 = vpop.f32.mrf.mxu0
      %v432 = vpop.f32.mrf.mxu0
      %v433 = vadd.f32 0.0, %v432
      %v434 = vpop.f32.mrf.mxu0
      %435 = vdwg.mxu0
      %v436 = vld [vmem:[#allocation2] sm:$0xff]
      %v437 = vld [vmem:[#allocation2 + $0x8] sm:$0xff]
      %v438 = vld [vmem:[#allocation2 + $0x10] sm:$0xff]
      %v439 = vld [vmem:[#allocation2 + $0x18] sm:$0xff]
      %v440 = vld [vmem:[#allocation2 + $0x20] sm:$0xff]
      %v441 = vld [vmem:[#allocation2 + $0x28] sm:$0xff]
      %v442 = vld [vmem:[#allocation2 + $0x30] sm:$0xff]
      %v443 = vld [vmem:[#allocation2 + $0x38] sm:$0xff]
      %v444 = vadd.f32 %v436, %v406
      %v445 = vadd.f32 %v437, %v409
      %v446 = vadd.f32 %v438, %v414
      %v447 = vadd.f32 %v439, %v417
      %v448 = vadd.f32 %v440, %v422
      %v449 = vadd.f32 %v441, %v425
      %v450 = vadd.f32 %v442, %v430
      %v451 = vadd.f32 %v443, %v433
      %452 = vst [vmem:[#allocation2] sm:$0xff] %v444
      %453 = vst [vmem:[#allocation2 + $0x8] sm:$0xff] %v445
      %454 = vst [vmem:[#allocation2 + $0x10] sm:$0xff] %v446
      %455 = vst [vmem:[#allocation2 + $0x18] sm:$0xff] %v447
      %456 = vst [vmem:[#allocation2 + $0x20] sm:$0xff] %v448
      %457 = vst [vmem:[#allocation2 + $0x28] sm:$0xff] %v449
      %458 = vst [vmem:[#allocation2 + $0x30] sm:$0xff] %v450
      %459 = vst [vmem:[#allocation2 + $0x38] sm:$0xff] %v451
      %v460 = vld [vmem:[#allocation2] sm:$0xff]
      %v461 = vld [vmem:[#allocation2 + $0x8] sm:$0xff]
      %v462 = vld [vmem:[#allocation2 + $0x10] sm:$0xff]
      %v463 = vld [vmem:[#allocation2 + $0x18] sm:$0xff]
      %v464 = vld [vmem:[#allocation2 + $0x20] sm:$0xff]
      %v465 = vld [vmem:[#allocation2 + $0x28] sm:$0xff]
      %v466 = vld [vmem:[#allocation2 + $0x30] sm:$0xff]
      %v467 = vld [vmem:[#allocation2 + $0x38] sm:$0xff]
      %v468 = vpack.c.bf16 %v461, %v460
      %v469 = vpack.c.bf16 %v463, %v462
      %v470 = vpack.c.bf16 %v465, %v464
      %v471 = vpack.c.bf16 %v467, %v466
      %v476 = vunpack.c.l.b16 %v468
      %v477 = vunpack.c.h.b16 %v468
      %v478 = vunpack.c.l.b16 %v469
      %v479 = vunpack.c.h.b16 %v469
      %v480 = vunpack.c.l.b16 %v470
      %v481 = vunpack.c.h.b16 %v470
      %v482 = vunpack.c.l.b16 %v471
      %v483 = vunpack.c.h.b16 %v471
      %v484 = vpack.c.b16 %v476, %v476
      %v485 = vpack.c.b16 %v477, %v477
      %v486 = vpack.c.b16 %v478, %v478
      %v487 = vpack.c.b16 %v479, %v479
      %v488 = vpack.c.b16 %v480, %v480
      %v489 = vpack.c.b16 %v481, %v481
      %v490 = vpack.c.b16 %v482, %v482
      %v491 = vpack.c.b16 %v483, %v483
      %500 = vst [vmem:[%s177] sm:$0xf] %v484
      %501 = vst [vmem:[%s177 + $0x4] sm:$0xf] %v485
      %502 = vst [vmem:[%s177 + $0x8] sm:$0xf] %v486
      %503 = vst [vmem:[%s177 + $0xc] sm:$0xf] %v487
      %504 = vst [vmem:[%s177 + $0x10] sm:$0xf] %v488
      %505 = vst [vmem:[%s177 + $0x14] sm:$0xf] %v489
      %506 = vst [vmem:[%s177 + $0x18] sm:$0xf] %v490
      %507 = vst [vmem:[%s177 + $0x1c] sm:$0xf] %v491
      %v508 = vadd.f32 %v460, %v461
      %v509 = vadd.f32 %v508, %v462
      %v510 = vadd.f32 %v509, %v463
      %v511 = vadd.f32 %v510, %v464
      %v512 = vadd.f32 %v511, %v465
      %v513 = vadd.f32 %v512, %v466
      %v514 = vadd.f32 %v513, %v467
      %v515 = vrot.slane %v514, 4
      %v516 = vadd.f32 %v514, %v515
      %v517 = vrot.slane %v516, 2
      %v518 = vadd.f32 %v516, %v517
      %v519 = vrot.slane %v518, 1
      %v520 = vadd.f32 %v518, %v519
      %521 = vst [vmem:[%s181] sm:$0x1] %v520
      %v522 = vmul.f32 %v460, %v460
      %v523 = vmul.f32 %v461, %v461
      %v524 = vmul.f32 %v462, %v462
      %v525 = vmul.f32 %v463, %v463
      %v526 = vmul.f32 %v464, %v464
      %v527 = vmul.f32 %v465, %v465
      %v528 = vmul.f32 %v466, %v466
      %v529 = vmul.f32 %v467, %v467
      %v530 = vadd.f32 %v522, %v523
      %v531 = vadd.f32 %v530, %v524
      %v532 = vadd.f32 %v531, %v525
      %v533 = vadd.f32 %v532, %v526
      %v534 = vadd.f32 %v533, %v527
      %v535 = vadd.f32 %v534, %v528
      %v536 = vadd.f32 %v535, %v529
      %v537 = vrot.slane %v536, 4
      %v538 = vadd.f32 %v536, %v537
      %v539 = vrot.slane %v538, 2
      %v540 = vadd.f32 %v538, %v539
      %v541 = vrot.slane %v540, 1
      %v542 = vadd.f32 %v540, %v541
      %543 = vst [vmem:[%s181 + $0x1] sm:$0x1] %v542
      %p544 = scmp.lt.s32.totalorder %s15, 1
      %s545 = scalar_select %p544, %s15, 1
      %s546 = smul.addr %s545, 8
      %s547 = smul.addr %s546, 4
      %s548 = scalar_lea.vmem %s2, %s547
      %p549 = scmp.lt.s32.totalorder %s15, 1
      %s550 = scalar_select %p549, %s15, 1
      %s551 = smul.addr %s550, 2
      %s552 = scalar_lea.vmem %s3, %s551
      // Predicated region
      $region29: #{cnn_block_pallas.2} parent=27 // pred_check
        %p553 = pneg %p80
      $region30: #{cnn_block_pallas.2} parent=27 // pred_check_branch
        %555 = sbr.rel (%p553) target = $region32
      $region31: #{cnn_block_pallas.2} parent=27 // pred_region
        _
      $region32: #{cnn_block_pallas.2} parent=27 // pred_fallthru
        _
      // Predicated region
      $region33: #{cnn_block_pallas.2} parent=27 // pred_check
        %p556 = pneg %p106
      $region34: #{cnn_block_pallas.2} parent=27 // pred_check_branch
        %558 = sbr.rel (%p556) target = $region36
      $region35: #{cnn_block_pallas.2} parent=27 // pred_region
        _
      $region36: #{cnn_block_pallas.2} parent=27 // pred_fallthru
        _
    $region28: #{cnn_block_pallas.2} parent=5 // pred_fallthru
      _
    %p559 = scmp.le.s32.totalorder 2, %s10
    // Predicated region
    $region37: #{cnn_block_pallas.2} parent=5 // pred_check
      %p560 = pneg %p559
    $region38: #{cnn_block_pallas.2} parent=5 // pred_check_branch
      %562 = sbr.rel (%p560) target = $region40
    $region39: #{cnn_block_pallas.2} parent=5 // pred_region
      %s563 = ssub.s32 %s10, 2
      // Predicated region
      $region41: #{cnn_block_pallas.2} parent=39 // pred_check
        %p564 = pneg %p86
      $region42: #{cnn_block_pallas.2} parent=39 // pred_check_branch
        %566 = sbr.rel (%p564) target = $region44
      $region43: #{cnn_block_pallas.2} parent=39 // pred_region
        %p567 = scmp.lt.s32.totalorder %s16, 1
        %s568 = scalar_select %p567, %s16, 1
        %s569 = smul.addr %s568, 8
        %s570 = smul.addr %s569, 4
        %s571 = scalar_lea.vmem %s2, %s570
      $region44: #{cnn_block_pallas.2} parent=39 // pred_fallthru
        _
      // Predicated region
      $region45: #{cnn_block_pallas.2} parent=39 // pred_check
        %p572 = pneg %p112
      $region46: #{cnn_block_pallas.2} parent=39 // pred_check_branch
        %574 = sbr.rel (%p572) target = $region48
      $region47: #{cnn_block_pallas.2} parent=39 // pred_region
        %p575 = scmp.lt.s32.totalorder %s16, 1
        %s576 = scalar_select %p575, %s16, 1
        %s577 = smul.addr %s576, 2
        %s578 = scalar_lea.vmem %s3, %s577
      $region48: #{cnn_block_pallas.2} parent=39 // pred_fallthru
        _
    $region40: #{cnn_block_pallas.2} parent=5 // pred_fallthru
      _
  $region6: #{cnn_block_pallas.2} parent=0 // loop_footer
    %s14 = sadd.s32 1, %s10
  $region7: #{cnn_block_pallas.2} parent=0 // loop_footer_branch
    %9 = sbr.rel target = $region3
  $region8: #{cnn_block_pallas.2} parent=0 // loop_exit
    _

</llo_original>
